<compile_context>
chip_gen: v7x
topology: tpu7x:2x2x1
jax: 0.10.0
libtpu: 0.0.40
codegen_flags: <defaults>
</compile_context>

<pallas_src>
import jax
import jax.numpy as jnp
from jax.experimental import pallas as pl
from jax.experimental.pallas import tpu as pltpu


# ---------------- packed parameter slab layout ----------------
F_PAD = 16                       # padded per-sample feature / hidden / action width
FOLD = 8                         # samples folded into the lane dimension
LANES = FOLD * F_PAD             # 128 = full vreg lane width
# Block-diagonal (128,128) weights, one per layer, then the segment-sum matrix, then
# one (1,128) bias/mask row per layer (each on an 8-row-aligned offset).
OFF_W1, OFF_W2, OFF_W3, OFF_W4, OFF_W5 = 0, 128, 256, 384, 512
OFF_SEG = 640
OFF_B1, OFF_B2, OFF_B3, OFF_B4, OFF_B5 = 768, 776, 784, 792, 800
SLAB_ROWS = 808                  # 808 * 128 * 4 B ~= 404 KiB

B_TILE_DEFAULT = 1024            # samples per grid step for large batches


def pack_params(params):
    """Pack w1..w5 / b1..b4 into one (SLAB_ROWS, 128) f32 slab.

    Weights become block-diagonal kron(I_8, W) so 8 samples share one 128-wide matmul;
    biases are tiled 8x along lanes; a block-ones matrix for the per-sample softmax
    denominator and a -1e30 action-lane mask row are pre-baked.  Do this ONCE per set
    of weights and reuse across forward calls.
    """
    n_act = params["w5"].shape[1]
    eye = jnp.eye(FOLD, dtype=jnp.float32)

    def pad_w(a):
        a = jnp.asarray(a, jnp.float32)
        r, c = a.shape
        return jnp.zeros((F_PAD, F_PAD), jnp.float32).at[:r, :c].set(a)

    def bd(a):                        # (128,128) block-diagonal
        return jnp.kron(eye, pad_w(a))

    def bias_row(a):                  # (1,128): padded bias tiled across the 8 folds
        a = jnp.asarray(a, jnp.float32).reshape(1, -1)
        a = jnp.zeros((1, F_PAD), jnp.float32).at[:, :a.shape[1]].set(a)
        return jnp.tile(a, (1, FOLD))

    slab = jnp.zeros((SLAB_ROWS, LANES), jnp.float32)
    slab = slab.at[OFF_W1:OFF_W1 + LANES].set(bd(params["w1"]))
    slab = slab.at[OFF_W2:OFF_W2 + LANES].set(bd(params["w2"]))
    slab = slab.at[OFF_W3:OFF_W3 + LANES].set(bd(params["w3"]))
    slab = slab.at[OFF_W4:OFF_W4 + LANES].set(bd(params["w4"]))
    slab = slab.at[OFF_W5:OFF_W5 + LANES].set(bd(params["w5"]))
    # Segment-sum matrix: e @ kron(I_8, ones) broadcasts each sample's 16-lane sum
    # across its own 16-lane segment.
    slab = slab.at[OFF_SEG:OFF_SEG + LANES].set(
        jnp.kron(eye, jnp.ones((F_PAD, F_PAD), jnp.float32)))
    slab = slab.at[OFF_B1:OFF_B1 + 1].set(bias_row(params["b1"]))
    slab = slab.at[OFF_B2:OFF_B2 + 1].set(bias_row(params["b2"]))
    slab = slab.at[OFF_B3:OFF_B3 + 1].set(bias_row(params["b3"]))
    slab = slab.at[OFF_B4:OFF_B4 + 1].set(bias_row(params["b4"]))
    # Final layer has no bias; this row only injects -1e30 into padded action lanes so
    # they vanish from the softmax (mask baked into the slab, not recomputed per tile).
    mask = jnp.where(jnp.arange(F_PAD) < n_act, 0.0, -1e30).astype(jnp.float32)
    slab = slab.at[OFF_B5:OFF_B5 + 1].set(jnp.tile(mask.reshape(1, F_PAD), (1, FOLD)))
    return slab


def _pg_forward_kernel(x_ref, p_ref, o_ref):
    """Fused MLP + softmax for one lane-folded batch tile (tile_rows, 128)."""
    x = x_ref[...]  # 8 samples x 16 padded features per row, fully lane-dense.

    def layer(h, off_w, off_b):
        w = p_ref[off_w:off_w + LANES, :]   # (128,128) block-diag kron(I_8, W)
        b = p_ref[off_b:off_b + 1, :]       # (1,128) bias tiled across the 8 folds
        return jnp.tanh(jnp.dot(h, w, preferred_element_type=jnp.float32) + b)

    h = layer(x, OFF_W1, OFF_B1)
    h = layer(h, OFF_W2, OFF_B2)
    h = layer(h, OFF_W3, OFF_B3)
    h = layer(h, OFF_W4, OFF_B4)

    # Final linear (no bias). The B5 row only masks padded action lanes to -1e30.
    logits = jnp.dot(h, p_ref[OFF_W5:OFF_W5 + LANES, :],
                     preferred_element_type=jnp.float32) + p_ref[OFF_B5:OFF_B5 + 1, :]

    # Row max spans all 8 folded samples but is constant over each sample's 16 lanes,
    # so per-sample softmax is unchanged; it only provides numerical stability.
    m = jnp.max(logits, axis=-1, keepdims=True)
    e = jnp.exp(logits - m)                      # masked lanes -> exp(-huge) = 0
    # Per-sample denominator broadcast across its 16-lane segment via MXU matmul.
    denom = jnp.dot(e, p_ref[OFF_SEG:OFF_SEG + LANES, :],
                    preferred_element_type=jnp.float32)
    # Exact division keeps 1e-5 parity with jax.nn.softmax (pl.reciprocal(approx=True)
    # would hit the EUP but needs a Newton step to reach that tolerance).
    o_ref[...] = (e / denom).astype(o_ref.dtype)


def policy_gradient_forward(x, param_slab, *, n_actions, b_tile=B_TILE_DEFAULT):
    """x: (B, n_features) float32. param_slab: pack_params(...) output.

    Returns (B, n_actions) softmax probabilities, matching model(x) in PyTorch.
    """
    B, F = x.shape
    assert F <= F_PAD and n_actions <= F_PAD

    # Folded rows must be a multiple of 8 sublanes -> pad batch to a multiple of 64
    # samples.  Small/medium batches run as a single grid step (no per-step overhead);
    # large batches tile at b_tile samples per step.
    if B <= b_tile:
        tile_samples = pl.cdiv(B, FOLD * 8) * FOLD * 8
    else:
        tile_samples = pl.cdiv(b_tile, FOLD * 8) * FOLD * 8
    B_pad = pl.cdiv(B, tile_samples) * tile_samples
    n_tiles = B_pad // tile_samples
    tile_rows = tile_samples // FOLD
    rows = B_pad // FOLD

    # Single pad of the tail (batch) + padded feature lanes, then fold 8 samples/row.
    x_fold = jnp.pad(x.astype(jnp.float32),
                     ((0, B_pad - B), (0, F_PAD - F))).reshape(rows, LANES)

    cost = pl.CostEstimate(
        flops=B * 2 * (F * 16 + 3 * 16 * 16 + 16 * n_actions + 16 * n_actions),
        transcendentals=B * (4 * 16 + n_actions),
        bytes_accessed=4 * (B * F + int(param_slab.size) + B * n_actions),
    )

    out = pl.pallas_call(
        _pg_forward_kernel,
        out_shape=jax.ShapeDtypeStruct((rows, LANES), jnp.float32),
        grid=(n_tiles,),
        in_specs=[
            pl.BlockSpec((tile_rows, LANES), lambda i: (i, 0)),    # x tile, pipelined
            # Constant block index -> the ~404 KiB slab is DMA'd once and stays
            # resident in VMEM across all grid steps.
            pl.BlockSpec((SLAB_ROWS, LANES), lambda i: (0, 0)),
        ],
        out_specs=pl.BlockSpec((tile_rows, LANES), lambda i: (i, 0)),  # lane-dense store
        compiler_params=pltpu.CompilerParams(
            dimension_semantics=("parallel",)),                    # shards tiles on v7x
        cost_estimate=cost,
    )(x_fold, param_slab)

    # Unfold and slice off batch padding + padded action lanes.
    return out.reshape(B_pad, F_PAD)[:B, :n_actions]


def init_params(key, n_features, n_actions):
    """Deterministic init mimicking nn.Linear (uniform +/- 1/sqrt(fan_in)).

    Weights stored as (in_features, out_features); biases as (1, out) rows.
    """
    dims = [(n_features, 16), (16, 16), (16, 16), (16, 16), (16, n_actions)]
    params = {}
    keys = jax.random.split(key, 2 * len(dims))
    for idx, (fan_in, fan_out) in enumerate(dims):
        bound = 1.0 / jnp.sqrt(jnp.float32(fan_in))
        wk, bk = keys[2 * idx], keys[2 * idx + 1]
        params[f"w{idx + 1}"] = jax.random.uniform(
            wk, (fan_in, fan_out), jnp.float32, -bound, bound)
        if idx < 4:  # l5 has bias=False
            params[f"b{idx + 1}"] = jax.random.uniform(
                bk, (1, fan_out), jnp.float32, -bound, bound)
    return params


def _reference_forward(x, params):
    h = jnp.tanh(x @ params["w1"] + params["b1"])
    h = jnp.tanh(h @ params["w2"] + params["b2"])
    h = jnp.tanh(h @ params["w3"] + params["b3"])
    h = jnp.tanh(h @ params["w4"] + params["b4"])
    logits = h @ params["w5"]
    return jax.nn.softmax(logits, axis=-1)


if __name__ == "__main__":
    n_features, n_actions, batch = 9, 9, 200   # exercises batch padding

    key = jax.random.PRNGKey(0)
    pkey, xkey = jax.random.split(key)
    params = init_params(pkey, n_features, n_actions)
    x = jax.random.normal(xkey, (batch, n_features), jnp.float32)

    slab = pack_params(params)                 # pack once, reuse across calls
    ref = _reference_forward(x, params)

    # Single-tile path (default: whole batch in one grid step).
    out = policy_gradient_forward(x, slab, n_actions=n_actions)
    out = jax.block_until_ready(out)
    assert out.shape == (batch, n_actions)
    assert jnp.allclose(out, ref, atol=1e-5, rtol=1e-5)
    assert jnp.allclose(jnp.sum(out, axis=-1), 1.0, atol=1e-5)

    # Multi-tile path (64-sample tiles -> 4 pipelined grid steps).
    out2 = policy_gradient_forward(x, slab, n_actions=n_actions, b_tile=64)
    out2 = jax.block_until_ready(out2)
    assert jnp.allclose(out2, ref, atol=1e-5, rtol=1e-5)

    # TODO(synk): choose_action / learn (Categorical sampling, Adam update, returns) are
    # host-side RL bookkeeping, not part of the forward pass; not implemented as kernels.
    # TODO(synk): for B=1 per-step rollout, a cross-pallas_call weight-prefetch (P10,
    # slab kept resident in VMEM across calls) would remove the per-step slab DMA.
    print("KERNEL_OK")
</pallas_src>

<mosaic_0001>
module attributes {stable_mosaic.version = 11 : i64} {
  func.func @_pg_forward_kernel(%arg0: i32, %arg1: memref<32x128xf32, #tpu.memory_space<vmem>>, %arg2: memref<808x128xf32, #tpu.memory_space<vmem>>, %arg3: memref<32x128xf32, #tpu.memory_space<vmem>>) attributes {dimension_semantics = [#tpu.dimension_semantics<parallel>], iteration_bounds = array<i64: 1>, scalar_prefetch = 0 : i64, scratch_operands = 0 : i64, tpu.core_type = #tpu.core_type<tc>, window_params = [{transform_indices = @transform_0, window_bounds = array<i64: 32, 128>}, {pipeline_mode = #tpu.pipeline_mode<synchronous>, transform_indices = @transform_1, window_bounds = array<i64: 808, 128>}, {transform_indices = @transform_2, window_bounds = array<i64: 32, 128>}]} {
    %c0 = arith.constant 0 : index
    %c0_0 = arith.constant 0 : index
    %0 = vector.load %arg1[%c0, %c0_0] : memref<32x128xf32, #tpu.memory_space<vmem>>, vector<32x128xf32>
    %c0_1 = arith.constant 0 : index
    %c0_2 = arith.constant 0 : index
    %1 = vector.load %arg2[%c0_1, %c0_2] : memref<808x128xf32, #tpu.memory_space<vmem>>, vector<128x128xf32>
    %c768 = arith.constant 768 : index
    %c0_3 = arith.constant 0 : index
    %2 = vector.load %arg2[%c768, %c0_3] : memref<808x128xf32, #tpu.memory_space<vmem>>, vector<1x128xf32>
    %cst = arith.constant dense<0.000000e+00> : vector<32x128xf32>
    %3 = tpu.matmul %0, %1, %cst {dimension_numbers = #tpu.dot_dimension_numbers<[1], [0], [0], [1], [0, 0, 1, 1], [], []>} : vector<32x128xf32>, vector<128x128xf32>, vector<32x128xf32> -> vector<32x128xf32>
    %4 = vector.broadcast %2 : vector<1x128xf32> to vector<32x128xf32>
    %5 = arith.addf %3, %4 : vector<32x128xf32>
    %6 = math.tanh %5 : vector<32x128xf32>
    %c128 = arith.constant 128 : index
    %c0_4 = arith.constant 0 : index
    %7 = vector.load %arg2[%c128, %c0_4] : memref<808x128xf32, #tpu.memory_space<vmem>>, vector<128x128xf32>
    %c776 = arith.constant 776 : index
    %c0_5 = arith.constant 0 : index
    %8 = vector.load %arg2[%c776, %c0_5] : memref<808x128xf32, #tpu.memory_space<vmem>>, vector<1x128xf32>
    %cst_6 = arith.constant dense<0.000000e+00> : vector<32x128xf32>
    %9 = tpu.matmul %6, %7, %cst_6 {dimension_numbers = #tpu.dot_dimension_numbers<[1], [0], [0], [1], [0, 0, 1, 1], [], []>} : vector<32x128xf32>, vector<128x128xf32>, vector<32x128xf32> -> vector<32x128xf32>
    %10 = vector.broadcast %8 : vector<1x128xf32> to vector<32x128xf32>
    %11 = arith.addf %9, %10 : vector<32x128xf32>
    %12 = math.tanh %11 : vector<32x128xf32>
    %c256 = arith.constant 256 : index
    %c0_7 = arith.constant 0 : index
    %13 = vector.load %arg2[%c256, %c0_7] : memref<808x128xf32, #tpu.memory_space<vmem>>, vector<128x128xf32>
    %c784 = arith.constant 784 : index
    %c0_8 = arith.constant 0 : index
    %14 = vector.load %arg2[%c784, %c0_8] : memref<808x128xf32, #tpu.memory_space<vmem>>, vector<1x128xf32>
    %cst_9 = arith.constant dense<0.000000e+00> : vector<32x128xf32>
    %15 = tpu.matmul %12, %13, %cst_9 {dimension_numbers = #tpu.dot_dimension_numbers<[1], [0], [0], [1], [0, 0, 1, 1], [], []>} : vector<32x128xf32>, vector<128x128xf32>, vector<32x128xf32> -> vector<32x128xf32>
    %16 = vector.broadcast %14 : vector<1x128xf32> to vector<32x128xf32>
    %17 = arith.addf %15, %16 : vector<32x128xf32>
    %18 = math.tanh %17 : vector<32x128xf32>
    %c384 = arith.constant 384 : index
    %c0_10 = arith.constant 0 : index
    %19 = vector.load %arg2[%c384, %c0_10] : memref<808x128xf32, #tpu.memory_space<vmem>>, vector<128x128xf32>
    %c792 = arith.constant 792 : index
    %c0_11 = arith.constant 0 : index
    %20 = vector.load %arg2[%c792, %c0_11] : memref<808x128xf32, #tpu.memory_space<vmem>>, vector<1x128xf32>
    %cst_12 = arith.constant dense<0.000000e+00> : vector<32x128xf32>
    %21 = tpu.matmul %18, %19, %cst_12 {dimension_numbers = #tpu.dot_dimension_numbers<[1], [0], [0], [1], [0, 0, 1, 1], [], []>} : vector<32x128xf32>, vector<128x128xf32>, vector<32x128xf32> -> vector<32x128xf32>
    %22 = vector.broadcast %20 : vector<1x128xf32> to vector<32x128xf32>
    %23 = arith.addf %21, %22 : vector<32x128xf32>
    %24 = math.tanh %23 : vector<32x128xf32>
    %c512 = arith.constant 512 : index
    %c0_13 = arith.constant 0 : index
    %25 = vector.load %arg2[%c512, %c0_13] : memref<808x128xf32, #tpu.memory_space<vmem>>, vector<128x128xf32>
    %cst_14 = arith.constant dense<0.000000e+00> : vector<32x128xf32>
    %26 = tpu.matmul %24, %25, %cst_14 {dimension_numbers = #tpu.dot_dimension_numbers<[1], [0], [0], [1], [0, 0, 1, 1], [], []>} : vector<32x128xf32>, vector<128x128xf32>, vector<32x128xf32> -> vector<32x128xf32>
    %c800 = arith.constant 800 : index
    %c0_15 = arith.constant 0 : index
    %27 = vector.load %arg2[%c800, %c0_15] : memref<808x128xf32, #tpu.memory_space<vmem>>, vector<1x128xf32>
    %28 = vector.broadcast %27 : vector<1x128xf32> to vector<32x128xf32>
    %29 = arith.addf %26, %28 : vector<32x128xf32>
    %cst_16 = arith.constant dense<0xFF800000> : vector<32xf32>
    %30 = vector.multi_reduction <maximumf>, %29, %cst_16 [1] : vector<32x128xf32> to vector<32xf32>
    %31 = vector.shape_cast %30 : vector<32xf32> to vector<32x1xf32>
    %32 = vector.broadcast %31 : vector<32x1xf32> to vector<32x128xf32>
    %33 = arith.subf %29, %32 : vector<32x128xf32>
    %34 = math.exp %33 : vector<32x128xf32>
    %c640 = arith.constant 640 : index
    %c0_17 = arith.constant 0 : index
    %35 = vector.load %arg2[%c640, %c0_17] : memref<808x128xf32, #tpu.memory_space<vmem>>, vector<128x128xf32>
    %cst_18 = arith.constant dense<0.000000e+00> : vector<32x128xf32>
    %36 = tpu.matmul %34, %35, %cst_18 {dimension_numbers = #tpu.dot_dimension_numbers<[1], [0], [0], [1], [0, 0, 1, 1], [], []>} : vector<32x128xf32>, vector<128x128xf32>, vector<32x128xf32> -> vector<32x128xf32>
    %37 = arith.divf %34, %36 : vector<32x128xf32>
    %c0_19 = arith.constant 0 : index
    %c0_20 = arith.constant 0 : index
    %38 = vector.load %arg3[%c0_19, %c0_20] : memref<32x128xf32, #tpu.memory_space<vmem>>, vector<32x128xf32>
    tpu.vector_store %arg3[%c0_19, %c0_20], %37 {strides = array<i32>} : memref<32x128xf32, #tpu.memory_space<vmem>>, vector<32x128xf32>,
    return
  }
  func.func @transform_0(%arg0: i32) -> (i32, i32) {
    %c0_i32 = arith.constant 0 : i32
    %c0_i32_0 = arith.constant 0 : i32
    return %arg0, %c0_i32 : i32, i32
  }
  func.func @transform_1(%arg0: i32) -> (i32, i32) {
    %c0_i32 = arith.constant 0 : i32
    %c0_i32_0 = arith.constant 0 : i32
    %c0_i32_1 = arith.constant 0 : i32
    return %c0_i32, %c0_i32_0 : i32, i32
  }
  func.func @transform_2(%arg0: i32) -> (i32, i32) {
    %c0_i32 = arith.constant 0 : i32
    %c0_i32_0 = arith.constant 0 : i32
    return %arg0, %c0_i32 : i32, i32
  }
}

</mosaic_0001>

<llo_original>
// kernel: tpu_custom_call.1
$region0: #{tpu_custom_call.1}
  #allocation0 [shape = 'u32[]', space=smem, size = 0x4, offset = 0x4, fixed_abs, tag = 'smem constant byte address 0x4 - core index']
  #allocation1 [shape = 'u32[144,128]{1,0:T(1,128)}', space=vmem, size = 0x12000, scoped, tag = 'internal scratch']
  %s0 = inlined_call_operand.hbm [shape: f32[32,128], index: 0, kind: input, shape index: {}]
  %s1 = inlined_call_operand.hbm [shape: f32[808,128], index: 1, kind: input, shape index: {}]
  %s2 = inlined_call_operand.hbm [shape: f32[32,128], index: 2, kind: output, shape index: {}]
  %s3 = sld [smem:[#allocation0]]
  $region26: #{tpu_custom_call.1} parent=0
    _
  %s5 = ssub.s32 1, %s3
  %s6 = scalar_select 0, %s5, %s3
  $region1: #{tpu_custom_call.1} parent=0
    #allocation2 [shape = 'u8[16384]{0}', space=vmem, size = 0x4000, scoped, tag = 'input window, operand 0, single buffered']
    #allocation3 [shape = 's32[1]{0}', space=sflag, size = 0x4, scoped, tag = 'scoped memory for tpu_custom_call.1']
    #allocation4 [shape = 's32[1]{0}', space=sflag, size = 0x4, scoped, tag = 'scoped memory for tpu_custom_call.1']
    #allocation5 [shape = 'u8[413696]{0}', space=vmem, size = 0x65000, scoped, tag = 'input window, operand 1, single buffered']
    #allocation6 [shape = 's32[1]{0}', space=sflag, size = 0x4, scoped, tag = 'scoped memory for tpu_custom_call.1']
    #allocation7 [shape = 'u8[16384]{0}', space=vmem, size = 0x4000, scoped, tag = 'output window, operand 0, single buffered']
    %7 = vsyncpa [#allocation3], 0
    %8 = vsyncpa [#allocation6], 0
    %9 = vsyncpa [#allocation4], 0
    // Predicated region
    $region2: #{tpu_custom_call.1} parent=1 // pred_check
      _
    $region3: #{tpu_custom_call.1} parent=1 // pred_check_branch
      %11 = sbr.rel (0) target = $region5
    $region4: #{tpu_custom_call.1} parent=1 // pred_region
      %s13 = ssub.s32 512, 512
      %14 = vsyncadd [#allocation3], %s13
      %s15 = sshll.u32 [#allocation2], 4
      %s16 = int_to_ptr.vmem [resolvable:$true] %s15
      %21 = dma.hbm_to_vmem [thread:$0]  %s0, 512, %s16, [#allocation3], 128, 128, 8
    $region5: #{tpu_custom_call.1} parent=1 // pred_fallthru
      _
    // Predicated region
    $region6: #{tpu_custom_call.1} parent=1 // pred_check
      _
    $region7: #{tpu_custom_call.1} parent=1 // pred_check_branch
      %23 = sbr.rel (0) target = $region9
    $region8: #{tpu_custom_call.1} parent=1 // pred_region
      %s25 = ssub.s32 12928, 12928
      %26 = vsyncadd [#allocation6], %s25
      %s27 = sshll.u32 [#allocation5], 4
      %s28 = int_to_ptr.vmem [resolvable:$true] %s27
      %33 = dma.hbm_to_vmem [thread:$0]  %s1, 12928, %s28, [#allocation6], 128, 128, 8
    $region9: #{tpu_custom_call.1} parent=1 // pred_fallthru
      _
    // Predicated region
    $region10: #{tpu_custom_call.1} parent=1 // pred_check
      _
    $region11: #{tpu_custom_call.1} parent=1 // pred_check_branch
      %35 = sbr.rel (0) target = $region13
    $region12: #{tpu_custom_call.1} parent=1 // pred_region
      %36 = dma.done [#allocation3], 512
    $region13: #{tpu_custom_call.1} parent=1 // pred_fallthru
      _
    // Predicated region
    $region14: #{tpu_custom_call.1} parent=1 // pred_check
      _
    $region15: #{tpu_custom_call.1} parent=1 // pred_check_branch
      %38 = sbr.rel (0) target = $region17
    $region16: #{tpu_custom_call.1} parent=1 // pred_region
      %39 = dma.done [#allocation6], 12928
    $region17: #{tpu_custom_call.1} parent=1 // pred_fallthru
      _
    %v40 = vld [vmem:[#allocation2] sm:$0xff]
    %v41 = vld [vmem:[#allocation2 + $0x8] sm:$0xff]
    %v42 = vld [vmem:[#allocation2 + $0x10] sm:$0xff]
    %v43 = vld [vmem:[#allocation2 + $0x18] sm:$0xff]
    %v44 = vld [vmem:[#allocation5] sm:$0xff]
    %v45 = vld [vmem:[#allocation5 + $0x8] sm:$0xff]
    %v46 = vld [vmem:[#allocation5 + $0x10] sm:$0xff]
    %v47 = vld [vmem:[#allocation5 + $0x18] sm:$0xff]
    %v48 = vld [vmem:[#allocation5 + $0x20] sm:$0xff]
    %v49 = vld [vmem:[#allocation5 + $0x28] sm:$0xff]
    %v50 = vld [vmem:[#allocation5 + $0x30] sm:$0xff]
    %v51 = vld [vmem:[#allocation5 + $0x38] sm:$0xff]
    %v52 = vld [vmem:[#allocation5 + $0x40] sm:$0xff]
    %v53 = vld [vmem:[#allocation5 + $0x48] sm:$0xff]
    %v54 = vld [vmem:[#allocation5 + $0x50] sm:$0xff]
    %v55 = vld [vmem:[#allocation5 + $0x58] sm:$0xff]
    %v56 = vld [vmem:[#allocation5 + $0x60] sm:$0xff]
    %v57 = vld [vmem:[#allocation5 + $0x68] sm:$0xff]
    %v58 = vld [vmem:[#allocation5 + $0x70] sm:$0xff]
    %v59 = vld [vmem:[#allocation5 + $0x78] sm:$0xff]
    %v60 = vld [vmem:[#allocation5 + $0x300] sm:$0x1]
    %v61 = vlaneseq
    %v62 = vshrl.u32 %v61, 7
    %v63 = vsub.s32 0, %v62
    %v64 = vrot.slane %v60, %v63
    %65 = vmatprep.subr.mxu0 0.0
    %66 = vmatpush1.msra.mxu0 %v44
    %67 = vmatprep.subr.mxu0 0.0
    %68 = vmatpush1.msra.mxu0 %v45
    %69 = vmatprep.subr.mxu0 0.0
    %70 = vmatpush1.msra.mxu0 %v46
    %71 = vmatprep.subr.mxu0 0.0
    %72 = vmatpush1.msra.mxu0 %v47
    %73 = vmatprep.subr.mxu0 0.0
    %74 = vmatpush1.msra.mxu0 %v48
    %75 = vmatprep.subr.mxu0 0.0
    %76 = vmatpush1.msra.mxu0 %v49
    %77 = vmatprep.subr.mxu0 0.0
    %78 = vmatpush1.msra.mxu0 %v50
    %79 = vmatprep.subr.mxu0 0.0
    %80 = vmatpush1.msra.mxu0 %v51
    %81 = vmatprep.subr.mxu0 0.0
    %82 = vmatpush1.msra.mxu0 %v52
    %83 = vmatprep.subr.mxu0 0.0
    %84 = vmatpush1.msra.mxu0 %v53
    %85 = vmatprep.subr.mxu0 0.0
    %86 = vmatpush1.msra.mxu0 %v54
    %87 = vmatprep.subr.mxu0 0.0
    %88 = vmatpush1.msra.mxu0 %v55
    %89 = vmatprep.subr.mxu0 0.0
    %90 = vmatpush1.msra.mxu0 %v56
    %91 = vmatprep.subr.mxu0 0.0
    %92 = vmatpush1.msra.mxu0 %v57
    %93 = vmatprep.subr.mxu0 0.0
    %94 = vmatpush1.msra.mxu0 %v58
    %95 = vmatprep.subr.mxu0 0.0
    %96 = vmatpush1.msra.mxu0 %v59
    %97 = vmatprep.subr.mxu0 0.0
    %98 = vmatpush1.msra.mxu0 0.0
    %99 = vmatprep.subr.mxu0 0.0
    %100 = vmatpush1.msra.mxu0 0.0
    %101 = vmatprep.subr.mxu0 0.0
    %102 = vmatpush1.msra.mxu0 0.0
    %103 = vmatprep.subr.mxu0 0.0
    %104 = vmatpush1.msra.mxu0 0.0
    %105 = vmatprep.subr.mxu0 0.0
    %106 = vmatpush1.msra.mxu0 0.0
    %107 = vmatprep.subr.mxu0 0.0
    %108 = vmatpush1.msra.mxu0 0.0
    %109 = vmatprep.subr.mxu0 0.0
    %110 = vmatpush1.msra.mxu0 0.0
    %111 = vmatprep.subr.mxu0 0.0
    %112 = vmatpush1.msra.mxu0 0.0
    %113 = vmatprep.subr.mxu0 0.0
    %114 = vmatpush1.msra.mxu0 0.0
    %115 = vmatprep.subr.mxu0 0.0
    %116 = vmatpush1.msra.mxu0 0.0
    %117 = vmatprep.subr.mxu0 0.0
    %118 = vmatpush1.msra.mxu0 0.0
    %119 = vmatprep.subr.mxu0 0.0
    %120 = vmatpush1.msra.mxu0 0.0
    %121 = vmatprep.subr.mxu0 0.0
    %122 = vmatpush1.msra.mxu0 0.0
    %123 = vmatprep.subr.mxu0 0.0
    %124 = vmatpush1.msra.mxu0 0.0
    %125 = vmatprep.subr.mxu0 0.0
    %126 = vmatpush1.msra.mxu0 0.0
    %127 = vmatprep.subr.mxu0 0.0
    %128 = vmatpush1.msra.mxu0 0.0
    %129 = vmatprep.mubr.f32.mxu0 0.0
    %130 = vmatmul.mubr.f32.gmra.mrb[0].mxu0 %v40
    %v131 = vpop.f32.mrb[0].mxu0
    %v132 = vadd.f32 %v64, %v131
    %v133 = vpop.f32.mrb[0].mxu0
    %134 = vmatprep.mubr.f32.mxu0 0.0
    %135 = vmatmul.mubr.f32.gmra.mrb[0].mxu0 %v41
    %v136 = vpop.f32.mrb[0].mxu0
    %v137 = vadd.f32 %v64, %v136
    %v138 = vpop.f32.mrb[0].mxu0
    %139 = vmatprep.mubr.f32.mxu0 0.0
    %140 = vmatmul.mubr.f32.gmra.mrb[0].mxu0 %v42
    %v141 = vpop.f32.mrb[0].mxu0
    %v142 = vadd.f32 %v64, %v141
    %v143 = vpop.f32.mrb[0].mxu0
    %144 = vmatprep.mubr.f32.mxu0 0.0
    %145 = vmatmul.mubr.f32.gmra.mrb[0].mxu0 %v43
    %v146 = vpop.f32.mrb[0].mxu0
    %v147 = vadd.f32 %v64, %v146
    %v148 = vpop.f32.mrb[0].mxu0
    %149 = vdwg.mxu0
    %v150 = vtanh.pop %v132
    %v151 = vtanh.pop %v137
    %v152 = vtanh.pop %v142
    %v153 = vtanh.pop %v147
    %v154 = vld [vmem:[#allocation5 + $0x80] sm:$0xff]
    %v155 = vld [vmem:[#allocation5 + $0x88] sm:$0xff]
    %v156 = vld [vmem:[#allocation5 + $0x90] sm:$0xff]
    %v157 = vld [vmem:[#allocation5 + $0x98] sm:$0xff]
    %v158 = vld [vmem:[#allocation5 + $0xa0] sm:$0xff]
    %v159 = vld [vmem:[#allocation5 + $0xa8] sm:$0xff]
    %v160 = vld [vmem:[#allocation5 + $0xb0] sm:$0xff]
    %v161 = vld [vmem:[#allocation5 + $0xb8] sm:$0xff]
    %v162 = vld [vmem:[#allocation5 + $0xc0] sm:$0xff]
    %v163 = vld [vmem:[#allocation5 + $0xc8] sm:$0xff]
    %v164 = vld [vmem:[#allocation5 + $0xd0] sm:$0xff]
    %v165 = vld [vmem:[#allocation5 + $0xd8] sm:$0xff]
    %v166 = vld [vmem:[#allocation5 + $0xe0] sm:$0xff]
    %v167 = vld [vmem:[#allocation5 + $0xe8] sm:$0xff]
    %v168 = vld [vmem:[#allocation5 + $0xf0] sm:$0xff]
    %v169 = vld [vmem:[#allocation5 + $0xf8] sm:$0xff]
    %v170 = vld [vmem:[#allocation5 + $0x308] sm:$0x1]
    %v171 = vlaneseq
    %v172 = vshrl.u32 %v171, 7
    %v173 = vsub.s32 0, %v172
    %v174 = vrot.slane %v170, %v173
    %175 = vmatprep.subr.mxu0 0.0
    %176 = vmatpush1.msra.mxu0 %v154
    %177 = vmatprep.subr.mxu0 0.0
    %178 = vmatpush1.msra.mxu0 %v155
    %179 = vmatprep.subr.mxu0 0.0
    %180 = vmatpush1.msra.mxu0 %v156
    %181 = vmatprep.subr.mxu0 0.0
    %182 = vmatpush1.msra.mxu0 %v157
    %183 = vmatprep.subr.mxu0 0.0
    %184 = vmatpush1.msra.mxu0 %v158
    %185 = vmatprep.subr.mxu0 0.0
    %186 = vmatpush1.msra.mxu0 %v159
    %187 = vmatprep.subr.mxu0 0.0
    %188 = vmatpush1.msra.mxu0 %v160
    %189 = vmatprep.subr.mxu0 0.0
    %190 = vmatpush1.msra.mxu0 %v161
    %191 = vmatprep.subr.mxu0 0.0
    %192 = vmatpush1.msra.mxu0 %v162
    %193 = vmatprep.subr.mxu0 0.0
    %194 = vmatpush1.msra.mxu0 %v163
    %195 = vmatprep.subr.mxu0 0.0
    %196 = vmatpush1.msra.mxu0 %v164
    %197 = vmatprep.subr.mxu0 0.0
    %198 = vmatpush1.msra.mxu0 %v165
    %199 = vmatprep.subr.mxu0 0.0
    %200 = vmatpush1.msra.mxu0 %v166
    %201 = vmatprep.subr.mxu0 0.0
    %202 = vmatpush1.msra.mxu0 %v167
    %203 = vmatprep.subr.mxu0 0.0
    %204 = vmatpush1.msra.mxu0 %v168
    %205 = vmatprep.subr.mxu0 0.0
    %206 = vmatpush1.msra.mxu0 %v169
    %207 = vmatprep.subr.mxu0 0.0
    %208 = vmatpush1.msra.mxu0 0.0
    %209 = vmatprep.subr.mxu0 0.0
    %210 = vmatpush1.msra.mxu0 0.0
    %211 = vmatprep.subr.mxu0 0.0
    %212 = vmatpush1.msra.mxu0 0.0
    %213 = vmatprep.subr.mxu0 0.0
    %214 = vmatpush1.msra.mxu0 0.0
    %215 = vmatprep.subr.mxu0 0.0
    %216 = vmatpush1.msra.mxu0 0.0
    %217 = vmatprep.subr.mxu0 0.0
    %218 = vmatpush1.msra.mxu0 0.0
    %219 = vmatprep.subr.mxu0 0.0
    %220 = vmatpush1.msra.mxu0 0.0
    %221 = vmatprep.subr.mxu0 0.0
    %222 = vmatpush1.msra.mxu0 0.0
    %223 = vmatprep.subr.mxu0 0.0
    %224 = vmatpush1.msra.mxu0 0.0
    %225 = vmatprep.subr.mxu0 0.0
    %226 = vmatpush1.msra.mxu0 0.0
    %227 = vmatprep.subr.mxu0 0.0
    %228 = vmatpush1.msra.mxu0 0.0
    %229 = vmatprep.subr.mxu0 0.0
    %230 = vmatpush1.msra.mxu0 0.0
    %231 = vmatprep.subr.mxu0 0.0
    %232 = vmatpush1.msra.mxu0 0.0
    %233 = vmatprep.subr.mxu0 0.0
    %234 = vmatpush1.msra.mxu0 0.0
    %235 = vmatprep.subr.mxu0 0.0
    %236 = vmatpush1.msra.mxu0 0.0
    %237 = vmatprep.subr.mxu0 0.0
    %238 = vmatpush1.msra.mxu0 0.0
    %239 = vmatprep.mubr.f32.mxu0 0.0
    %240 = vmatmul.mubr.f32.gmra.mrb[0].mxu0 %v150
    %v241 = vpop.f32.mrb[0].mxu0
    %v242 = vadd.f32 %v174, %v241
    %v243 = vpop.f32.mrb[0].mxu0
    %244 = vmatprep.mubr.f32.mxu0 0.0
    %245 = vmatmul.mubr.f32.gmra.mrb[0].mxu0 %v151
    %v246 = vpop.f32.mrb[0].mxu0
    %v247 = vadd.f32 %v174, %v246
    %v248 = vpop.f32.mrb[0].mxu0
    %249 = vmatprep.mubr.f32.mxu0 0.0
    %250 = vmatmul.mubr.f32.gmra.mrb[0].mxu0 %v152
    %v251 = vpop.f32.mrb[0].mxu0
    %v252 = vadd.f32 %v174, %v251
    %v253 = vpop.f32.mrb[0].mxu0
    %254 = vmatprep.mubr.f32.mxu0 0.0
    %255 = vmatmul.mubr.f32.gmra.mrb[0].mxu0 %v153
    %v256 = vpop.f32.mrb[0].mxu0
    %v257 = vadd.f32 %v174, %v256
    %v258 = vpop.f32.mrb[0].mxu0
    %259 = vdwg.mxu0
    %v260 = vtanh.pop %v242
    %v261 = vtanh.pop %v247
    %v262 = vtanh.pop %v252
    %v263 = vtanh.pop %v257
    %v264 = vld [vmem:[#allocation5 + $0x100] sm:$0xff]
    %v265 = vld [vmem:[#allocation5 + $0x108] sm:$0xff]
    %v266 = vld [vmem:[#allocation5 + $0x110] sm:$0xff]
    %v267 = vld [vmem:[#allocation5 + $0x118] sm:$0xff]
    %v268 = vld [vmem:[#allocation5 + $0x120] sm:$0xff]
    %v269 = vld [vmem:[#allocation5 + $0x128] sm:$0xff]
    %v270 = vld [vmem:[#allocation5 + $0x130] sm:$0xff]
    %v271 = vld [vmem:[#allocation5 + $0x138] sm:$0xff]
    %v272 = vld [vmem:[#allocation5 + $0x140] sm:$0xff]
    %v273 = vld [vmem:[#allocation5 + $0x148] sm:$0xff]
    %v274 = vld [vmem:[#allocation5 + $0x150] sm:$0xff]
    %v275 = vld [vmem:[#allocation5 + $0x158] sm:$0xff]
    %v276 = vld [vmem:[#allocation5 + $0x160] sm:$0xff]
    %v277 = vld [vmem:[#allocation5 + $0x168] sm:$0xff]
    %v278 = vld [vmem:[#allocation5 + $0x170] sm:$0xff]
    %v279 = vld [vmem:[#allocation5 + $0x178] sm:$0xff]
    %v280 = vld [vmem:[#allocation5 + $0x310] sm:$0x1]
    %v281 = vlaneseq
    %v282 = vshrl.u32 %v281, 7
    %v283 = vsub.s32 0, %v282
    %v284 = vrot.slane %v280, %v283
    %285 = vmatprep.subr.mxu0 0.0
    %286 = vmatpush1.msra.mxu0 %v264
    %287 = vmatprep.subr.mxu0 0.0
    %288 = vmatpush1.msra.mxu0 %v265
    %289 = vmatprep.subr.mxu0 0.0
    %290 = vmatpush1.msra.mxu0 %v266
    %291 = vmatprep.subr.mxu0 0.0
    %292 = vmatpush1.msra.mxu0 %v267
    %293 = vmatprep.subr.mxu0 0.0
    %294 = vmatpush1.msra.mxu0 %v268
    %295 = vmatprep.subr.mxu0 0.0
    %296 = vmatpush1.msra.mxu0 %v269
    %297 = vmatprep.subr.mxu0 0.0
    %298 = vmatpush1.msra.mxu0 %v270
    %299 = vmatprep.subr.mxu0 0.0
    %300 = vmatpush1.msra.mxu0 %v271
    %301 = vmatprep.subr.mxu0 0.0
    %302 = vmatpush1.msra.mxu0 %v272
    %303 = vmatprep.subr.mxu0 0.0
    %304 = vmatpush1.msra.mxu0 %v273
    %305 = vmatprep.subr.mxu0 0.0
    %306 = vmatpush1.msra.mxu0 %v274
    %307 = vmatprep.subr.mxu0 0.0
    %308 = vmatpush1.msra.mxu0 %v275
    %309 = vmatprep.subr.mxu0 0.0
    %310 = vmatpush1.msra.mxu0 %v276
    %311 = vmatprep.subr.mxu0 0.0
    %312 = vmatpush1.msra.mxu0 %v277
    %313 = vmatprep.subr.mxu0 0.0
    %314 = vmatpush1.msra.mxu0 %v278
    %315 = vmatprep.subr.mxu0 0.0
    %316 = vmatpush1.msra.mxu0 %v279
    %317 = vmatprep.subr.mxu0 0.0
    %318 = vmatpush1.msra.mxu0 0.0
    %319 = vmatprep.subr.mxu0 0.0
    %320 = vmatpush1.msra.mxu0 0.0
    %321 = vmatprep.subr.mxu0 0.0
    %322 = vmatpush1.msra.mxu0 0.0
    %323 = vmatprep.subr.mxu0 0.0
    %324 = vmatpush1.msra.mxu0 0.0
    %325 = vmatprep.subr.mxu0 0.0
    %326 = vmatpush1.msra.mxu0 0.0
    %327 = vmatprep.subr.mxu0 0.0
    %328 = vmatpush1.msra.mxu0 0.0
    %329 = vmatprep.subr.mxu0 0.0
    %330 = vmatpush1.msra.mxu0 0.0
    %331 = vmatprep.subr.mxu0 0.0
    %332 = vmatpush1.msra.mxu0 0.0
    %333 = vmatprep.subr.mxu0 0.0
    %334 = vmatpush1.msra.mxu0 0.0
    %335 = vmatprep.subr.mxu0 0.0
    %336 = vmatpush1.msra.mxu0 0.0
    %337 = vmatprep.subr.mxu0 0.0
    %338 = vmatpush1.msra.mxu0 0.0
    %339 = vmatprep.subr.mxu0 0.0
    %340 = vmatpush1.msra.mxu0 0.0
    %341 = vmatprep.subr.mxu0 0.0
    %342 = vmatpush1.msra.mxu0 0.0
    %343 = vmatprep.subr.mxu0 0.0
    %344 = vmatpush1.msra.mxu0 0.0
    %345 = vmatprep.subr.mxu0 0.0
    %346 = vmatpush1.msra.mxu0 0.0
    %347 = vmatprep.subr.mxu0 0.0
    %348 = vmatpush1.msra.mxu0 0.0
    %349 = vmatprep.mubr.f32.mxu0 0.0
    %350 = vmatmul.mubr.f32.gmra.mrb[0].mxu0 %v260
    %v351 = vpop.f32.mrb[0].mxu0
    %v352 = vadd.f32 %v284, %v351
    %v353 = vpop.f32.mrb[0].mxu0
    %354 = vmatprep.mubr.f32.mxu0 0.0
    %355 = vmatmul.mubr.f32.gmra.mrb[0].mxu0 %v261
    %v356 = vpop.f32.mrb[0].mxu0
    %v357 = vadd.f32 %v284, %v356
    %v358 = vpop.f32.mrb[0].mxu0
    %359 = vmatprep.mubr.f32.mxu0 0.0
    %360 = vmatmul.mubr.f32.gmra.mrb[0].mxu0 %v262
    %v361 = vpop.f32.mrb[0].mxu0
    %v362 = vadd.f32 %v284, %v361
    %v363 = vpop.f32.mrb[0].mxu0
    %364 = vmatprep.mubr.f32.mxu0 0.0
    %365 = vmatmul.mubr.f32.gmra.mrb[0].mxu0 %v263
    %v366 = vpop.f32.mrb[0].mxu0
    %v367 = vadd.f32 %v284, %v366
    %v368 = vpop.f32.mrb[0].mxu0
    %369 = vdwg.mxu0
    %v370 = vtanh.pop %v352
    %v371 = vtanh.pop %v357
    %v372 = vtanh.pop %v362
    %v373 = vtanh.pop %v367
    %v374 = vld [vmem:[#allocation5 + $0x180] sm:$0xff]
    %v375 = vld [vmem:[#allocation5 + $0x188] sm:$0xff]
    %v376 = vld [vmem:[#allocation5 + $0x190] sm:$0xff]
    %v377 = vld [vmem:[#allocation5 + $0x198] sm:$0xff]
    %v378 = vld [vmem:[#allocation5 + $0x1a0] sm:$0xff]
    %v379 = vld [vmem:[#allocation5 + $0x1a8] sm:$0xff]
    %v380 = vld [vmem:[#allocation5 + $0x1b0] sm:$0xff]
    %v381 = vld [vmem:[#allocation5 + $0x1b8] sm:$0xff]
    %v382 = vld [vmem:[#allocation5 + $0x1c0] sm:$0xff]
    %v383 = vld [vmem:[#allocation5 + $0x1c8] sm:$0xff]
    %v384 = vld [vmem:[#allocation5 + $0x1d0] sm:$0xff]
    %v385 = vld [vmem:[#allocation5 + $0x1d8] sm:$0xff]
    %v386 = vld [vmem:[#allocation5 + $0x1e0] sm:$0xff]
    %v387 = vld [vmem:[#allocation5 + $0x1e8] sm:$0xff]
    %v388 = vld [vmem:[#allocation5 + $0x1f0] sm:$0xff]
    %v389 = vld [vmem:[#allocation5 + $0x1f8] sm:$0xff]
    %v390 = vld [vmem:[#allocation5 + $0x318] sm:$0x1]
    %v391 = vlaneseq
    %v392 = vshrl.u32 %v391, 7
    %v393 = vsub.s32 0, %v392
    %v394 = vrot.slane %v390, %v393
    %395 = vmatprep.subr.mxu0 0.0
    %396 = vmatpush1.msra.mxu0 %v374
    %397 = vmatprep.subr.mxu0 0.0
    %398 = vmatpush1.msra.mxu0 %v375
    %399 = vmatprep.subr.mxu0 0.0
    %400 = vmatpush1.msra.mxu0 %v376
    %401 = vmatprep.subr.mxu0 0.0
    %402 = vmatpush1.msra.mxu0 %v377
    %403 = vmatprep.subr.mxu0 0.0
    %404 = vmatpush1.msra.mxu0 %v378
    %405 = vmatprep.subr.mxu0 0.0
    %406 = vmatpush1.msra.mxu0 %v379
    %407 = vmatprep.subr.mxu0 0.0
    %408 = vmatpush1.msra.mxu0 %v380
    %409 = vmatprep.subr.mxu0 0.0
    %410 = vmatpush1.msra.mxu0 %v381
    %411 = vmatprep.subr.mxu0 0.0
    %412 = vmatpush1.msra.mxu0 %v382
    %413 = vmatprep.subr.mxu0 0.0
    %414 = vmatpush1.msra.mxu0 %v383
    %415 = vmatprep.subr.mxu0 0.0
    %416 = vmatpush1.msra.mxu0 %v384
    %417 = vmatprep.subr.mxu0 0.0
    %418 = vmatpush1.msra.mxu0 %v385
    %419 = vmatprep.subr.mxu0 0.0
    %420 = vmatpush1.msra.mxu0 %v386
    %421 = vmatprep.subr.mxu0 0.0
    %422 = vmatpush1.msra.mxu0 %v387
    %423 = vmatprep.subr.mxu0 0.0
    %424 = vmatpush1.msra.mxu0 %v388
    %425 = vmatprep.subr.mxu0 0.0
    %426 = vmatpush1.msra.mxu0 %v389
    %427 = vmatprep.subr.mxu0 0.0
    %428 = vmatpush1.msra.mxu0 0.0
    %429 = vmatprep.subr.mxu0 0.0
    %430 = vmatpush1.msra.mxu0 0.0
    %431 = vmatprep.subr.mxu0 0.0
    %432 = vmatpush1.msra.mxu0 0.0
    %433 = vmatprep.subr.mxu0 0.0
    %434 = vmatpush1.msra.mxu0 0.0
    %435 = vmatprep.subr.mxu0 0.0
    %436 = vmatpush1.msra.mxu0 0.0
    %437 = vmatprep.subr.mxu0 0.0
    %438 = vmatpush1.msra.mxu0 0.0
    %439 = vmatprep.subr.mxu0 0.0
    %440 = vmatpush1.msra.mxu0 0.0
    %441 = vmatprep.subr.mxu0 0.0
    %442 = vmatpush1.msra.mxu0 0.0
    %443 = vmatprep.subr.mxu0 0.0
    %444 = vmatpush1.msra.mxu0 0.0
    %445 = vmatprep.subr.mxu0 0.0
    %446 = vmatpush1.msra.mxu0 0.0
    %447 = vmatprep.subr.mxu0 0.0
    %448 = vmatpush1.msra.mxu0 0.0
    %449 = vmatprep.subr.mxu0 0.0
    %450 = vmatpush1.msra.mxu0 0.0
    %451 = vmatprep.subr.mxu0 0.0
    %452 = vmatpush1.msra.mxu0 0.0
    %453 = vmatprep.subr.mxu0 0.0
    %454 = vmatpush1.msra.mxu0 0.0
    %455 = vmatprep.subr.mxu0 0.0
    %456 = vmatpush1.msra.mxu0 0.0
    %457 = vmatprep.subr.mxu0 0.0
    %458 = vmatpush1.msra.mxu0 0.0
    %459 = vmatprep.mubr.f32.mxu0 0.0
    %460 = vmatmul.mubr.f32.gmra.mrb[0].mxu0 %v370
    %v461 = vpop.f32.mrb[0].mxu0
    %v462 = vadd.f32 %v394, %v461
    %v463 = vpop.f32.mrb[0].mxu0
    %464 = vmatprep.mubr.f32.mxu0 0.0
    %465 = vmatmul.mubr.f32.gmra.mrb[0].mxu0 %v371
    %v466 = vpop.f32.mrb[0].mxu0
    %v467 = vadd.f32 %v394, %v466
    %v468 = vpop.f32.mrb[0].mxu0
    %469 = vmatprep.mubr.f32.mxu0 0.0
    %470 = vmatmul.mubr.f32.gmra.mrb[0].mxu0 %v372
    %v471 = vpop.f32.mrb[0].mxu0
    %v472 = vadd.f32 %v394, %v471
    %v473 = vpop.f32.mrb[0].mxu0
    %474 = vmatprep.mubr.f32.mxu0 0.0
    %475 = vmatmul.mubr.f32.gmra.mrb[0].mxu0 %v373
    %v476 = vpop.f32.mrb[0].mxu0
    %v477 = vadd.f32 %v394, %v476
    %v478 = vpop.f32.mrb[0].mxu0
    %479 = vdwg.mxu0
    %v480 = vtanh.pop %v462
    %v481 = vtanh.pop %v467
    %v482 = vtanh.pop %v472
    %v483 = vtanh.pop %v477
    %v484 = vld [vmem:[#allocation5 + $0x200] sm:$0xff]
    %v485 = vld [vmem:[#allocation5 + $0x208] sm:$0xff]
    %v486 = vld [vmem:[#allocation5 + $0x210] sm:$0xff]
    %v487 = vld [vmem:[#allocation5 + $0x218] sm:$0xff]
    %v488 = vld [vmem:[#allocation5 + $0x220] sm:$0xff]
    %v489 = vld [vmem:[#allocation5 + $0x228] sm:$0xff]
    %v490 = vld [vmem:[#allocation5 + $0x230] sm:$0xff]
    %v491 = vld [vmem:[#allocation5 + $0x238] sm:$0xff]
    %v492 = vld [vmem:[#allocation5 + $0x240] sm:$0xff]
    %v493 = vld [vmem:[#allocation5 + $0x248] sm:$0xff]
    %v494 = vld [vmem:[#allocation5 + $0x250] sm:$0xff]
    %v495 = vld [vmem:[#allocation5 + $0x258] sm:$0xff]
    %v496 = vld [vmem:[#allocation5 + $0x260] sm:$0xff]
    %v497 = vld [vmem:[#allocation5 + $0x268] sm:$0xff]
    %v498 = vld [vmem:[#allocation5 + $0x270] sm:$0xff]
    %v499 = vld [vmem:[#allocation5 + $0x278] sm:$0xff]
    %v500 = vld [vmem:[#allocation5 + $0x320] sm:$0x1]
    %v501 = vlaneseq
    %v502 = vshrl.u32 %v501, 7
    %v503 = vsub.s32 0, %v502
    %v504 = vrot.slane %v500, %v503
    %505 = vmatprep.subr.mxu0 0.0
    %506 = vmatpush1.msra.mxu0 %v484
    %507 = vmatprep.subr.mxu0 0.0
    %508 = vmatpush1.msra.mxu0 %v485
    %509 = vmatprep.subr.mxu0 0.0
    %510 = vmatpush1.msra.mxu0 %v486
    %511 = vmatprep.subr.mxu0 0.0
    %512 = vmatpush1.msra.mxu0 %v487
    %513 = vmatprep.subr.mxu0 0.0
    %514 = vmatpush1.msra.mxu0 %v488
    %515 = vmatprep.subr.mxu0 0.0
    %516 = vmatpush1.msra.mxu0 %v489
    %517 = vmatprep.subr.mxu0 0.0
    %518 = vmatpush1.msra.mxu0 %v490
    %519 = vmatprep.subr.mxu0 0.0
    %520 = vmatpush1.msra.mxu0 %v491
    %521 = vmatprep.subr.mxu0 0.0
    %522 = vmatpush1.msra.mxu0 %v492
    %523 = vmatprep.subr.mxu0 0.0
    %524 = vmatpush1.msra.mxu0 %v493
    %525 = vmatprep.subr.mxu0 0.0
    %526 = vmatpush1.msra.mxu0 %v494
    %527 = vmatprep.subr.mxu0 0.0
    %528 = vmatpush1.msra.mxu0 %v495
    %529 = vmatprep.subr.mxu0 0.0
    %530 = vmatpush1.msra.mxu0 %v496
    %531 = vmatprep.subr.mxu0 0.0
    %532 = vmatpush1.msra.mxu0 %v497
    %533 = vmatprep.subr.mxu0 0.0
    %534 = vmatpush1.msra.mxu0 %v498
    %535 = vmatprep.subr.mxu0 0.0
    %536 = vmatpush1.msra.mxu0 %v499
    %537 = vmatprep.subr.mxu0 0.0
    %538 = vmatpush1.msra.mxu0 0.0
    %539 = vmatprep.subr.mxu0 0.0
    %540 = vmatpush1.msra.mxu0 0.0
    %541 = vmatprep.subr.mxu0 0.0
    %542 = vmatpush1.msra.mxu0 0.0
    %543 = vmatprep.subr.mxu0 0.0
    %544 = vmatpush1.msra.mxu0 0.0
    %545 = vmatprep.subr.mxu0 0.0
    %546 = vmatpush1.msra.mxu0 0.0
    %547 = vmatprep.subr.mxu0 0.0
    %548 = vmatpush1.msra.mxu0 0.0
    %549 = vmatprep.subr.mxu0 0.0
    %550 = vmatpush1.msra.mxu0 0.0
    %551 = vmatprep.subr.mxu0 0.0
    %552 = vmatpush1.msra.mxu0 0.0
    %553 = vmatprep.subr.mxu0 0.0
    %554 = vmatpush1.msra.mxu0 0.0
    %555 = vmatprep.subr.mxu0 0.0
    %556 = vmatpush1.msra.mxu0 0.0
    %557 = vmatprep.subr.mxu0 0.0
    %558 = vmatpush1.msra.mxu0 0.0
    %559 = vmatprep.subr.mxu0 0.0
    %560 = vmatpush1.msra.mxu0 0.0
    %561 = vmatprep.subr.mxu0 0.0
    %562 = vmatpush1.msra.mxu0 0.0
    %563 = vmatprep.subr.mxu0 0.0
    %564 = vmatpush1.msra.mxu0 0.0
    %565 = vmatprep.subr.mxu0 0.0
    %566 = vmatpush1.msra.mxu0 0.0
    %567 = vmatprep.subr.mxu0 0.0
    %568 = vmatpush1.msra.mxu0 0.0
    %569 = vmatprep.mubr.f32.mxu0 0.0
    %570 = vmatmul.mubr.f32.gmra.mrb[0].mxu0 %v480
    %v571 = vpop.f32.mrb[0].mxu0
    %v572 = vadd.f32 %v504, %v571
    %v573 = vpop.f32.mrb[0].mxu0
    %574 = vmatprep.mubr.f32.mxu0 0.0
    %575 = vmatmul.mubr.f32.gmra.mrb[0].mxu0 %v481
    %v576 = vpop.f32.mrb[0].mxu0
    %v577 = vadd.f32 %v504, %v576
    %v578 = vpop.f32.mrb[0].mxu0
    %579 = vmatprep.mubr.f32.mxu0 0.0
    %580 = vmatmul.mubr.f32.gmra.mrb[0].mxu0 %v482
    %v581 = vpop.f32.mrb[0].mxu0
    %v582 = vadd.f32 %v504, %v581
    %v583 = vpop.f32.mrb[0].mxu0
    %584 = vmatprep.mubr.f32.mxu0 0.0
    %585 = vmatmul.mubr.f32.gmra.mrb[0].mxu0 %v483
    %v586 = vpop.f32.mrb[0].mxu0
    %v587 = vadd.f32 %v504, %v586
    %v588 = vpop.f32.mrb[0].mxu0
    %589 = vdwg.mxu0
    %590 = vmax.xlane.f32.xlu0 %v572
    %v591 = vpop.xlane.xlu0 %590
    %592 = vmax.xlane.f32.xlu0 %v577
    %v593 = vpop.xlane.xlu0 %592
    %594 = vmax.xlane.f32.xlu0 %v582
    %v595 = vpop.xlane.xlu0 %594
    %596 = vmax.xlane.f32.xlu0 %v587
    %v597 = vpop.xlane.xlu0 %596
    %v598 = vsub.f32 %v572, %v591
    %v599 = vsub.f32 %v577, %v593
    %v600 = vsub.f32 %v582, %v595
    %v601 = vsub.f32 %v587, %v597
    %v602 = vmul.f32 %v598, 1.442695
    %v603 = vpow.pop %v602
    %v604 = vmul.f32 %v599, 1.442695
    %v605 = vpow.pop %v604
    %v606 = vmul.f32 %v600, 1.442695
    %v607 = vpow.pop %v606
    %v608 = vmul.f32 %v601, 1.442695
    %v609 = vpow.pop %v608
    %v610 = vld [vmem:[#allocation5 + $0x280] sm:$0xff]
    %v611 = vld [vmem:[#allocation5 + $0x288] sm:$0xff]
    %v612 = vld [vmem:[#allocation5 + $0x290] sm:$0xff]
    %v613 = vld [vmem:[#allocation5 + $0x298] sm:$0xff]
    %v614 = vld [vmem:[#allocation5 + $0x2a0] sm:$0xff]
    %v615 = vld [vmem:[#allocation5 + $0x2a8] sm:$0xff]
    %v616 = vld [vmem:[#allocation5 + $0x2b0] sm:$0xff]
    %v617 = vld [vmem:[#allocation5 + $0x2b8] sm:$0xff]
    %v618 = vld [vmem:[#allocation5 + $0x2c0] sm:$0xff]
    %v619 = vld [vmem:[#allocation5 + $0x2c8] sm:$0xff]
    %v620 = vld [vmem:[#allocation5 + $0x2d0] sm:$0xff]
    %v621 = vld [vmem:[#allocation5 + $0x2d8] sm:$0xff]
    %v622 = vld [vmem:[#allocation5 + $0x2e0] sm:$0xff]
    %v623 = vld [vmem:[#allocation5 + $0x2e8] sm:$0xff]
    %v624 = vld [vmem:[#allocation5 + $0x2f0] sm:$0xff]
    %v625 = vld [vmem:[#allocation5 + $0x2f8] sm:$0xff]
    %626 = vmatprep.subr.mxu0 0.0
    %627 = vmatpush1.msra.mxu0 %v610
    %628 = vmatprep.subr.mxu0 0.0
    %629 = vmatpush1.msra.mxu0 %v611
    %630 = vmatprep.subr.mxu0 0.0
    %631 = vmatpush1.msra.mxu0 %v612
    %632 = vmatprep.subr.mxu0 0.0
    %633 = vmatpush1.msra.mxu0 %v613
    %634 = vmatprep.subr.mxu0 0.0
    %635 = vmatpush1.msra.mxu0 %v614
    %636 = vmatprep.subr.mxu0 0.0
    %637 = vmatpush1.msra.mxu0 %v615
    %638 = vmatprep.subr.mxu0 0.0
    %639 = vmatpush1.msra.mxu0 %v616
    %640 = vmatprep.subr.mxu0 0.0
    %641 = vmatpush1.msra.mxu0 %v617
    %642 = vmatprep.subr.mxu0 0.0
    %643 = vmatpush1.msra.mxu0 %v618
    %644 = vmatprep.subr.mxu0 0.0
    %645 = vmatpush1.msra.mxu0 %v619
    %646 = vmatprep.subr.mxu0 0.0
    %647 = vmatpush1.msra.mxu0 %v620
    %648 = vmatprep.subr.mxu0 0.0
    %649 = vmatpush1.msra.mxu0 %v621
    %650 = vmatprep.subr.mxu0 0.0
    %651 = vmatpush1.msra.mxu0 %v622
    %652 = vmatprep.subr.mxu0 0.0
    %653 = vmatpush1.msra.mxu0 %v623
    %654 = vmatprep.subr.mxu0 0.0
    %655 = vmatpush1.msra.mxu0 %v624
    %656 = vmatprep.subr.mxu0 0.0
    %657 = vmatpush1.msra.mxu0 %v625
    %658 = vmatprep.subr.mxu0 0.0
    %659 = vmatpush1.msra.mxu0 0.0
    %660 = vmatprep.subr.mxu0 0.0
    %661 = vmatpush1.msra.mxu0 0.0
    %662 = vmatprep.subr.mxu0 0.0
    %663 = vmatpush1.msra.mxu0 0.0
    %664 = vmatprep.subr.mxu0 0.0
    %665 = vmatpush1.msra.mxu0 0.0
    %666 = vmatprep.subr.mxu0 0.0
    %667 = vmatpush1.msra.mxu0 0.0
    %668 = vmatprep.subr.mxu0 0.0
    %669 = vmatpush1.msra.mxu0 0.0
    %670 = vmatprep.subr.mxu0 0.0
    %671 = vmatpush1.msra.mxu0 0.0
    %672 = vmatprep.subr.mxu0 0.0
    %673 = vmatpush1.msra.mxu0 0.0
    %674 = vmatprep.subr.mxu0 0.0
    %675 = vmatpush1.msra.mxu0 0.0
    %676 = vmatprep.subr.mxu0 0.0
    %677 = vmatpush1.msra.mxu0 0.0
    %678 = vmatprep.subr.mxu0 0.0
    %679 = vmatpush1.msra.mxu0 0.0
    %680 = vmatprep.subr.mxu0 0.0
    %681 = vmatpush1.msra.mxu0 0.0
    %682 = vmatprep.subr.mxu0 0.0
    %683 = vmatpush1.msra.mxu0 0.0
    %684 = vmatprep.subr.mxu0 0.0
    %685 = vmatpush1.msra.mxu0 0.0
    %686 = vmatprep.subr.mxu0 0.0
    %687 = vmatpush1.msra.mxu0 0.0
    %688 = vmatprep.subr.mxu0 0.0
    %689 = vmatpush1.msra.mxu0 0.0
    %690 = vmatprep.mubr.f32.mxu0 0.0
    %691 = vmatmul.mubr.f32.gmra.mrb[0].mxu0 %v603
    %v692 = vpop.f32.mrb[0].mxu0
    %v693 = vadd.f32 0.0, %v692
    %v694 = vpop.f32.mrb[0].mxu0
    %695 = vmatprep.mubr.f32.mxu0 0.0
    %696 = vmatmul.mubr.f32.gmra.mrb[0].mxu0 %v605
    %v697 = vpop.f32.mrb[0].mxu0
    %v698 = vadd.f32 0.0, %v697
    %v699 = vpop.f32.mrb[0].mxu0
    %700 = vmatprep.mubr.f32.mxu0 0.0
    %701 = vmatmul.mubr.f32.gmra.mrb[0].mxu0 %v607
    %v702 = vpop.f32.mrb[0].mxu0
    %v703 = vadd.f32 0.0, %v702
    %v704 = vpop.f32.mrb[0].mxu0
    %705 = vmatprep.mubr.f32.mxu0 0.0
    %706 = vmatmul.mubr.f32.gmra.mrb[0].mxu0 %v609
    %v707 = vpop.f32.mrb[0].mxu0
    %v708 = vadd.f32 0.0, %v707
    %v709 = vpop.f32.mrb[0].mxu0
    %710 = vdwg.mxu0
    %v711 = vrcp.pop %v693
    %v712 = vmul.f32 %v603, %v711
    %v713 = vrcp.pop %v698
    %v714 = vmul.f32 %v605, %v713
    %v715 = vrcp.pop %v703
    %v716 = vmul.f32 %v607, %v715
    %v717 = vrcp.pop %v708
    %v718 = vmul.f32 %v609, %v717
    %719 = vst [vmem:[#allocation7] sm:$0xff] %v712
    %720 = vst [vmem:[#allocation7 + $0x8] sm:$0xff] %v714
    %721 = vst [vmem:[#allocation7 + $0x10] sm:$0xff] %v716
    %722 = vst [vmem:[#allocation7 + $0x18] sm:$0xff] %v718
    // Predicated region
    $region18: #{tpu_custom_call.1} parent=1 // pred_check
      _
    $region19: #{tpu_custom_call.1} parent=1 // pred_check_branch
      %724 = sbr.rel (0) target = $region21
    $region20: #{tpu_custom_call.1} parent=1 // pred_region
      %s726 = ssub.s32 512, 512
      %727 = vsyncadd [#allocation4], %s726
      %s728 = sshll.u32 [#allocation7], 4
      %s729 = int_to_ptr.vmem [resolvable:$true] %s728
      %734 = dma.vmem_to_hbm [thread:$0]  %s729, 512, %s2, [#allocation4], 128, 128, 8
    $region21: #{tpu_custom_call.1} parent=1 // pred_fallthru
      _
    // Predicated region
    $region22: #{tpu_custom_call.1} parent=1 // pred_check
      _
    $region23: #{tpu_custom_call.1} parent=1 // pred_check_branch
      %736 = sbr.rel (0) target = $region25
    $region24: #{tpu_custom_call.1} parent=1 // pred_region
      %737 = dma.done [#allocation4], 512
    $region25: #{tpu_custom_call.1} parent=1 // pred_fallthru
      _
    %738 = vsyncpa [#allocation3], 1
    %739 = vsyncpa [#allocation6], 1
    %740 = vsyncpa [#allocation4], 1

</llo_original>
